<compile_context>
chip_gen: v6e
topology: v6e:2x2x1
jax: 0.10.0
libtpu: 0.0.40
codegen_flags: <defaults>
</compile_context>

<pallas_src>
import jax
import jax.numpy as jnp
from jax.experimental import pallas as pl
from jax.experimental.pallas import tpu as pltpu

HIDDEN = 768        # 6 * 128 -> lane-dense, unmasked stores
EPS = 1e-12         # matches nn.LayerNorm(768, eps=1e-12)
_MIB = 1 << 20


def layernorm_kernel(x_ref, gamma_ref, beta_ref, o_ref):
    # x_ref: (tm, HIDDEN) block; gamma/beta: (1, HIDDEN) f32; o_ref: (tm, HIDDEN)
    x = x_ref[...].astype(jnp.float32)
    mean = jnp.mean(x, axis=-1, keepdims=True)                 # XLU reduce
    centered = x - mean
    var = jnp.mean(centered * centered, axis=-1, keepdims=True)
    inv = jax.lax.rsqrt(var + EPS)                             # EUP
    out = centered * inv * gamma_ref[...] + beta_ref[...]      # params already f32
    o_ref[...] = out.astype(o_ref.dtype)


def _cdiv(a, b):
    return -(-a // b)


def _align_up(a, b):
    return _cdiv(a, b) * b


def _tpu_info():
    """Return (per-core VMEM bytes, tensorcores sharing the grid, device_kind)."""
    vmem = None
    kind = ""
    cores = 1
    try:
        vmem = int(pltpu.get_tpu_info().vmem_capacity_bytes)
    except Exception:  # pragma: no cover - defensive
        vmem = None
    try:
        dev = jax.devices()[0]
        kind = (dev.device_kind or "").lower()
        cores = int(getattr(dev, "num_cores", 1) or 1)
    except Exception:  # pragma: no cover - defensive
        pass
    if vmem is None:
        # Fallback heuristic: v7x-class parts expose 64 MiB/TC, older 128 MiB.
        vmem = 64 * _MIB if "7" in kind else 128 * _MIB
    if vmem <= 80 * _MIB:
        # v7x-class part: 2 TensorCores per chip share the parallel grid axis.
        cores = max(cores, 2)
    return vmem, cores, kind


def _select_config(rows, dtype):
    """Pick the row tile tm and vmem_limit_bytes for this generation/dtype/shape."""
    vmem, cores, kind = _tpu_info()
    itemsize = jnp.dtype(dtype).itemsize
    row_align = max(8, 32 // max(itemsize, 1))   # f32: 8, bf16: 16, int8/fp8: 32
    small_vmem = vmem <= 80 * _MIB               # v7x-class (64 MiB per TC)

    if small_vmem:
        # v7x: half the VMEM; f32 stays at 1024 rows, bf16 blocks are half-size.
        desired = 1024 if itemsize >= 4 else 2048
    elif "v6" in kind:
        desired = 4096                            # 128 MiB part, fast HBM
    else:
        desired = 2048                            # v5e and other 128 MiB parts

    # Keep >= ~8 grid steps on large inputs so double-buffering hides DMA.
    min_steps = 8
    if rows >= min_steps * row_align and rows // desired < min_steps:
        desired = max(row_align, ((rows // min_steps) // row_align) * row_align)

    tm = min(desired, max(row_align, rows))
    tm = _align_up(tm, row_align)

    # v7x: keep the parallel grid length even so both TensorCores get equal work.
    if cores > 1 and rows > tm:
        steps = _cdiv(rows, tm)
        if steps % 2 == 1:
            cand = _align_up(_cdiv(rows, steps + 1), row_align)
            if cand >= row_align and _cdiv(rows, cand) % 2 == 0:
                tm = cand

    # VMEM budget: double-buffered input + output blocks, full-block f32
    # temporaries (x cast, centered, pre-cast output), params, headroom.
    block_bytes = tm * HIDDEN * itemsize
    f32_tmp_bytes = 3 * tm * HIDDEN * 4
    param_bytes = 4 * HIDDEN * 4
    vmem_limit = 4 * block_bytes + f32_tmp_bytes + param_bytes + (8 << 20)
    cap = (50 * _MIB) if small_vmem else (100 * _MIB)
    vmem_limit = int(max(16 * _MIB, min(vmem_limit, cap)))
    return tm, vmem_limit


def layer_norm(x, gamma, beta):
    """x: (..., HIDDEN). LayerNorm over last axis with weight gamma, bias beta."""
    orig_shape = x.shape
    assert orig_shape[-1] == HIDDEN
    rows = 1
    for d in orig_shape[:-1]:
        rows *= d
    x2 = x.reshape(rows, HIDDEN)
    # Pre-cast affine params to f32 once in the wrapper (not per grid step).
    gamma2 = gamma.reshape(1, HIDDEN).astype(jnp.float32)
    beta2 = beta.reshape(1, HIDDEN).astype(jnp.float32)

    tm, vmem_limit = _select_config(rows, x.dtype)
    grid = (pl.cdiv(rows, tm),)   # partial last block handled by Pallas masking

    out = pl.pallas_call(
        layernorm_kernel,
        out_shape=jax.ShapeDtypeStruct((rows, HIDDEN), x.dtype),
        grid_spec=pltpu.PrefetchScalarGridSpec(
            num_scalar_prefetch=0,
            grid=grid,
            in_specs=[
                pl.BlockSpec((tm, HIDDEN), lambda i: (i, 0)),
                pl.BlockSpec((1, HIDDEN), lambda i: (0, 0)),
                pl.BlockSpec((1, HIDDEN), lambda i: (0, 0)),
            ],
            out_specs=pl.BlockSpec((tm, HIDDEN), lambda i: (i, 0)),
        ),
        compiler_params=pltpu.CompilerParams(
            dimension_semantics=("parallel",),
            vmem_limit_bytes=vmem_limit,
        ),
    )(x2, gamma2, beta2)

    return out.reshape(orig_shape)


if __name__ == "__main__":
    key = jax.random.PRNGKey(0)
    kx, kg, kb = jax.random.split(key, 3)
    batch, seq = 2, 8
    x = jax.random.normal(kx, (batch, seq, HIDDEN), dtype=jnp.float32)

    # nn.LayerNorm default init is weight=1, bias=0; use non-trivial affine
    # params here to exercise the full computation.
    gamma = 1.0 + 0.1 * jax.random.normal(kg, (HIDDEN,), dtype=jnp.float32)
    beta = 0.1 * jax.random.normal(kb, (HIDDEN,), dtype=jnp.float32)

    y = layer_norm(x, gamma, beta)
    y = jax.block_until_ready(y)

    # reference check in plain JAX (matches PyTorch LayerNorm semantics)
    mean = jnp.mean(x, axis=-1, keepdims=True)
    var = jnp.mean((x - mean) ** 2, axis=-1, keepdims=True)
    ref = (x - mean) / jnp.sqrt(var + EPS) * gamma + beta
    assert jnp.allclose(y, ref, atol=1e-5, rtol=1e-5), "mismatch vs reference"

    print("KERNEL_OK")
</pallas_src>

<mosaic_0001>
module attributes {stable_mosaic.version = 11 : i64} {
  func.func @layernorm_kernel(%arg0: i32, %arg1: memref<16x768xf32, #tpu.memory_space<vmem>>, %arg2: memref<1x768xf32, #tpu.memory_space<vmem>>, %arg3: memref<1x768xf32, #tpu.memory_space<vmem>>, %arg4: memref<16x768xf32, #tpu.memory_space<vmem>>) attributes {dimension_semantics = [#tpu.dimension_semantics<parallel>], iteration_bounds = array<i64: 1>, scalar_prefetch = 0 : i64, scratch_operands = 0 : i64, tpu.core_type = #tpu.core_type<tc>, window_params = [{transform_indices = @transform_0, window_bounds = array<i64: 16, 768>}, {pipeline_mode = #tpu.pipeline_mode<synchronous>, transform_indices = @transform_1, window_bounds = array<i64: 1, 768>}, {pipeline_mode = #tpu.pipeline_mode<synchronous>, transform_indices = @transform_2, window_bounds = array<i64: 1, 768>}, {transform_indices = @transform_3, window_bounds = array<i64: 16, 768>}]} {
    %c0 = arith.constant 0 : index
    %c0_0 = arith.constant 0 : index
    %0 = vector.load %arg1[%c0, %c0_0] : memref<16x768xf32, #tpu.memory_space<vmem>>, vector<16x768xf32>
    %cst = arith.constant dense<0.000000e+00> : vector<16xf32>
    %1 = vector.multi_reduction <add>, %0, %cst [1] : vector<16x768xf32> to vector<16xf32>
    %2 = vector.shape_cast %1 : vector<16xf32> to vector<16x1xf32>
    %cst_1 = arith.constant 7.680000e+02 : f32
    %3 = vector.broadcast %cst_1 : f32 to vector<16x1xf32>
    %4 = arith.divf %2, %3 : vector<16x1xf32>
    %5 = vector.broadcast %4 : vector<16x1xf32> to vector<16x768xf32>
    %6 = arith.subf %0, %5 : vector<16x768xf32>
    %7 = arith.mulf %6, %6 : vector<16x768xf32>
    %cst_2 = arith.constant dense<0.000000e+00> : vector<16xf32>
    %8 = vector.multi_reduction <add>, %7, %cst_2 [1] : vector<16x768xf32> to vector<16xf32>
    %9 = vector.shape_cast %8 : vector<16xf32> to vector<16x1xf32>
    %cst_3 = arith.constant 7.680000e+02 : f32
    %10 = vector.broadcast %cst_3 : f32 to vector<16x1xf32>
    %11 = arith.divf %9, %10 : vector<16x1xf32>
    %cst_4 = arith.constant 9.99999996E-13 : f32
    %12 = vector.broadcast %cst_4 : f32 to vector<16x1xf32>
    %13 = arith.addf %11, %12 : vector<16x1xf32>
    %14 = math.rsqrt %13 : vector<16x1xf32>
    %15 = vector.broadcast %14 : vector<16x1xf32> to vector<16x768xf32>
    %16 = arith.mulf %6, %15 : vector<16x768xf32>
    %c0_5 = arith.constant 0 : index
    %c0_6 = arith.constant 0 : index
    %17 = vector.load %arg2[%c0_5, %c0_6] : memref<1x768xf32, #tpu.memory_space<vmem>>, vector<1x768xf32>
    %18 = vector.broadcast %17 : vector<1x768xf32> to vector<16x768xf32>
    %19 = arith.mulf %16, %18 : vector<16x768xf32>
    %c0_7 = arith.constant 0 : index
    %c0_8 = arith.constant 0 : index
    %20 = vector.load %arg3[%c0_7, %c0_8] : memref<1x768xf32, #tpu.memory_space<vmem>>, vector<1x768xf32>
    %21 = vector.broadcast %20 : vector<1x768xf32> to vector<16x768xf32>
    %22 = arith.addf %19, %21 : vector<16x768xf32>
    %c0_9 = arith.constant 0 : index
    %c0_10 = arith.constant 0 : index
    %23 = vector.load %arg4[%c0_9, %c0_10] : memref<16x768xf32, #tpu.memory_space<vmem>>, vector<16x768xf32>
    tpu.vector_store %arg4[%c0_9, %c0_10], %22 {strides = array<i32>} : memref<16x768xf32, #tpu.memory_space<vmem>>, vector<16x768xf32>,
    return
  }
  func.func @transform_0(%arg0: i32) -> (i32, i32) {
    %c0_i32 = arith.constant 0 : i32
    %c0_i32_0 = arith.constant 0 : i32
    return %arg0, %c0_i32 : i32, i32
  }
  func.func @transform_1(%arg0: i32) -> (i32, i32) {
    %c0_i32 = arith.constant 0 : i32
    %c0_i32_0 = arith.constant 0 : i32
    %c0_i32_1 = arith.constant 0 : i32
    return %c0_i32, %c0_i32_0 : i32, i32
  }
  func.func @transform_2(%arg0: i32) -> (i32, i32) {
    %c0_i32 = arith.constant 0 : i32
    %c0_i32_0 = arith.constant 0 : i32
    %c0_i32_1 = arith.constant 0 : i32
    return %c0_i32, %c0_i32_0 : i32, i32
  }
  func.func @transform_3(%arg0: i32) -> (i32, i32) {
    %c0_i32 = arith.constant 0 : i32
    %c0_i32_0 = arith.constant 0 : i32
    return %arg0, %c0_i32 : i32, i32
  }
}

</mosaic_0001>

<llo_original>
// kernel: tpu_custom_call.1
$region0: #{tpu_custom_call.1}
  #allocation0 [shape = 'u32[]', space=smem, size = 0x4, offset = 0x4, fixed_abs, tag = 'smem constant byte address 0x4 - core index']
  #allocation1 [shape = 'u32[144,128]{1,0:T(1,128)}', space=vmem, size = 0x12000, scoped, tag = 'internal scratch']
  %s0 = inlined_call_operand.hbm [shape: f32[16,768], index: 0, kind: input, shape index: {}]
  %s1 = inlined_call_operand.hbm [shape: f32[1,768], index: 1, kind: input, shape index: {}]
  %s2 = inlined_call_operand.hbm [shape: f32[1,768], index: 2, kind: input, shape index: {}]
  %s3 = inlined_call_operand.hbm [shape: f32[16,768], index: 3, kind: output, shape index: {}]
  %s4 = sld [smem:[#allocation0]]
  $region34: #{tpu_custom_call.1} parent=0
    _
  %s6 = ssub.s32 1, %s4
  %s7 = scalar_select 0, %s6, %s4
  $region1: #{tpu_custom_call.1} parent=0
    #allocation2 [shape = 'u8[49152]{0}', space=vmem, size = 0xc000, scoped, tag = 'input window, operand 0, single buffered']
    #allocation3 [shape = 's32[1]{0}', space=sflag, size = 0x4, scoped, tag = 'scoped memory for tpu_custom_call.1']
    #allocation4 [shape = 's32[1]{0}', space=sflag, size = 0x4, scoped, tag = 'scoped memory for tpu_custom_call.1']
    #allocation5 [shape = 'u8[3072]{0}', space=vmem, size = 0xc00, scoped, tag = 'input window, operand 1, single buffered']
    #allocation6 [shape = 's32[1]{0}', space=sflag, size = 0x4, scoped, tag = 'scoped memory for tpu_custom_call.1']
    #allocation7 [shape = 'u8[3072]{0}', space=vmem, size = 0xc00, scoped, tag = 'input window, operand 2, single buffered']
    #allocation8 [shape = 'u8[49152]{0}', space=vmem, size = 0xc000, scoped, tag = 'output window, operand 0, single buffered']
    %8 = vsyncpa [#allocation3], 0
    %9 = vsyncpa [#allocation6], 0
    %10 = vsyncpa [#allocation4], 0
    // Predicated region
    $region2: #{tpu_custom_call.1} parent=1 // pred_check
      _
    $region3: #{tpu_custom_call.1} parent=1 // pred_check_branch
      %12 = sbr.rel (0) target = $region5
    $region4: #{tpu_custom_call.1} parent=1 // pred_region
      %s14 = ssub.s32 1536, 1536
      %15 = vsyncadd [#allocation3], %s14
      %s16 = sshll.u32 [#allocation2], 4
      %s17 = int_to_ptr.vmem [resolvable:$true] %s16
      %22 = dma.hbm_to_vmem [thread:$0]  %s0, 1536, %s17, [#allocation3], 768, 768, 48
    $region5: #{tpu_custom_call.1} parent=1 // pred_fallthru
      _
    // Predicated region
    $region6: #{tpu_custom_call.1} parent=1 // pred_check
      _
    $region7: #{tpu_custom_call.1} parent=1 // pred_check_branch
      %24 = sbr.rel (0) target = $region9
    $region8: #{tpu_custom_call.1} parent=1 // pred_region
      %s26 = ssub.s32 96, 96
      %27 = vsyncadd [#allocation6], %s26
      %s29 = sshll.u32 [#allocation5], 4
      %s30 = int_to_ptr.vmem [resolvable:$true] %s29
      %32 = dma.hbm_to_vmem [thread:$0]  %s1, 96, %s30, [#allocation6]
    $region9: #{tpu_custom_call.1} parent=1 // pred_fallthru
      _
    // Predicated region
    $region10: #{tpu_custom_call.1} parent=1 // pred_check
      _
    $region11: #{tpu_custom_call.1} parent=1 // pred_check_branch
      %34 = sbr.rel (0) target = $region13
    $region12: #{tpu_custom_call.1} parent=1 // pred_region
      %s36 = ssub.s32 96, 96
      %37 = vsyncadd [#allocation6], %s36
      %s39 = sshll.u32 [#allocation7], 4
      %s40 = int_to_ptr.vmem [resolvable:$true] %s39
      %42 = dma.hbm_to_vmem [thread:$0]  %s2, 96, %s40, [#allocation6]
    $region13: #{tpu_custom_call.1} parent=1 // pred_fallthru
      _
    // Predicated region
    $region14: #{tpu_custom_call.1} parent=1 // pred_check
      _
    $region15: #{tpu_custom_call.1} parent=1 // pred_check_branch
      %44 = sbr.rel (0) target = $region17
    $region16: #{tpu_custom_call.1} parent=1 // pred_region
      %45 = dma.done [#allocation3], 1536
    $region17: #{tpu_custom_call.1} parent=1 // pred_fallthru
      _
    // Predicated region
    $region18: #{tpu_custom_call.1} parent=1 // pred_check
      _
    $region19: #{tpu_custom_call.1} parent=1 // pred_check_branch
      %47 = sbr.rel (0) target = $region21
    $region20: #{tpu_custom_call.1} parent=1 // pred_region
      %48 = dma.done [#allocation6], 96
    $region21: #{tpu_custom_call.1} parent=1 // pred_fallthru
      _
    // Predicated region
    $region22: #{tpu_custom_call.1} parent=1 // pred_check
      _
    $region23: #{tpu_custom_call.1} parent=1 // pred_check_branch
      %50 = sbr.rel (0) target = $region25
    $region24: #{tpu_custom_call.1} parent=1 // pred_region
      %51 = dma.done [#allocation6], 96
    $region25: #{tpu_custom_call.1} parent=1 // pred_fallthru
      _
    %v52 = vld [vmem:[#allocation2] sm:$0xff]
    %v53 = vld [vmem:[#allocation2 + $0x8] sm:$0xff]
    %v54 = vld [vmem:[#allocation2 + $0x10] sm:$0xff]
    %v55 = vld [vmem:[#allocation2 + $0x18] sm:$0xff]
    %v56 = vld [vmem:[#allocation2 + $0x20] sm:$0xff]
    %v57 = vld [vmem:[#allocation2 + $0x28] sm:$0xff]
    %v58 = vld [vmem:[#allocation2 + $0x30] sm:$0xff]
    %v59 = vld [vmem:[#allocation2 + $0x38] sm:$0xff]
    %v60 = vld [vmem:[#allocation2 + $0x40] sm:$0xff]
    %v61 = vld [vmem:[#allocation2 + $0x48] sm:$0xff]
    %v62 = vld [vmem:[#allocation2 + $0x50] sm:$0xff]
    %v63 = vld [vmem:[#allocation2 + $0x58] sm:$0xff]
    %v64 = vadd.f32 %v52, %v53
    %v65 = vadd.f32 %v64, %v54
    %v66 = vadd.f32 %v65, %v55
    %v67 = vadd.f32 %v66, %v56
    %v68 = vadd.f32 %v67, %v57
    %69 = vadd.xlane.f32.xlu0 %v68
    %v70 = vpop.xlane.xlu0 %69
    %v71 = vadd.f32 %v58, %v59
    %v72 = vadd.f32 %v71, %v60
    %v73 = vadd.f32 %v72, %v61
    %v74 = vadd.f32 %v73, %v62
    %v75 = vadd.f32 %v74, %v63
    %76 = vadd.xlane.f32.xlu0 %v75
    %v77 = vpop.xlane.xlu0 %76
    %v78 = vrcp.pop 768.0
    %v79 = vmul.f32 %v70, %v78
    %v80 = vmul.f32 %v77, %v78
    %v81 = vsub.f32 %v52, %v79
    %v82 = vsub.f32 %v53, %v79
    %v83 = vsub.f32 %v54, %v79
    %v84 = vsub.f32 %v55, %v79
    %v85 = vsub.f32 %v56, %v79
    %v86 = vsub.f32 %v57, %v79
    %v87 = vsub.f32 %v58, %v80
    %v88 = vsub.f32 %v59, %v80
    %v89 = vsub.f32 %v60, %v80
    %v90 = vsub.f32 %v61, %v80
    %v91 = vsub.f32 %v62, %v80
    %v92 = vsub.f32 %v63, %v80
    %v93 = vmul.f32 %v81, %v81
    %v94 = vmul.f32 %v82, %v82
    %v95 = vmul.f32 %v83, %v83
    %v96 = vmul.f32 %v84, %v84
    %v97 = vmul.f32 %v85, %v85
    %v98 = vmul.f32 %v86, %v86
    %v99 = vmul.f32 %v87, %v87
    %v100 = vmul.f32 %v88, %v88
    %v101 = vmul.f32 %v89, %v89
    %v102 = vmul.f32 %v90, %v90
    %v103 = vmul.f32 %v91, %v91
    %v104 = vmul.f32 %v92, %v92
    %v105 = vadd.f32 %v93, %v94
    %v106 = vadd.f32 %v105, %v95
    %v107 = vadd.f32 %v106, %v96
    %v108 = vadd.f32 %v107, %v97
    %v109 = vadd.f32 %v108, %v98
    %110 = vadd.xlane.f32.xlu0 %v109
    %v111 = vpop.xlane.xlu0 %110
    %v112 = vadd.f32 %v99, %v100
    %v113 = vadd.f32 %v112, %v101
    %v114 = vadd.f32 %v113, %v102
    %v115 = vadd.f32 %v114, %v103
    %v116 = vadd.f32 %v115, %v104
    %117 = vadd.xlane.f32.xlu0 %v116
    %v118 = vpop.xlane.xlu0 %117
    %v119 = vmul.f32 %v111, %v78
    %v120 = vmul.f32 %v118, %v78
    %v121 = vadd.f32 %v119, 1e-12
    %v122 = vadd.f32 %v120, 1e-12
    %v123 = vrsqrt.pop %v121
    %v124 = vrsqrt.pop %v122
    %v125 = vmul.f32 %v81, %v123
    %v126 = vmul.f32 %v82, %v123
    %v127 = vmul.f32 %v83, %v123
    %v128 = vmul.f32 %v84, %v123
    %v129 = vmul.f32 %v85, %v123
    %v130 = vmul.f32 %v86, %v123
    %v131 = vmul.f32 %v87, %v124
    %v132 = vmul.f32 %v88, %v124
    %v133 = vmul.f32 %v89, %v124
    %v134 = vmul.f32 %v90, %v124
    %v135 = vmul.f32 %v91, %v124
    %v136 = vmul.f32 %v92, %v124
    %v137 = vld [vmem:[#allocation5] sm:$0x3f]
    %v139 = vlaneseq
    %v140 = vshrl.u32 %v139, 7
    %v141 = vsub.s32 0, %v140
    %v142 = vrot.slane %v137, %v141
    %v143 = vlaneseq
    %v144 = vshrl.u32 %v143, 7
    %v145 = vsub.s32 1, %v144
    %v146 = vrot.slane %v137, %v145
    %v147 = vlaneseq
    %v148 = vshrl.u32 %v147, 7
    %v149 = vsub.s32 2, %v148
    %v150 = vrot.slane %v137, %v149
    %v151 = vlaneseq
    %v152 = vshrl.u32 %v151, 7
    %v153 = vsub.s32 3, %v152
    %v154 = vrot.slane %v137, %v153
    %v155 = vlaneseq
    %v156 = vshrl.u32 %v155, 7
    %v157 = vsub.s32 4, %v156
    %v158 = vrot.slane %v137, %v157
    %v159 = vlaneseq
    %v160 = vshrl.u32 %v159, 7
    %v161 = vsub.s32 5, %v160
    %v162 = vrot.slane %v137, %v161
    %v169 = vmul.f32 %v125, %v142
    %v170 = vmul.f32 %v126, %v146
    %v171 = vmul.f32 %v127, %v150
    %v172 = vmul.f32 %v128, %v154
    %v173 = vmul.f32 %v129, %v158
    %v174 = vmul.f32 %v130, %v162
    %v175 = vmul.f32 %v131, %v142
    %v176 = vmul.f32 %v132, %v146
    %v177 = vmul.f32 %v133, %v150
    %v178 = vmul.f32 %v134, %v154
    %v179 = vmul.f32 %v135, %v158
    %v180 = vmul.f32 %v136, %v162
    %v181 = vld [vmem:[#allocation7] sm:$0x3f]
    %v183 = vlaneseq
    %v184 = vshrl.u32 %v183, 7
    %v185 = vsub.s32 0, %v184
    %v186 = vrot.slane %v181, %v185
    %v187 = vlaneseq
    %v188 = vshrl.u32 %v187, 7
    %v189 = vsub.s32 1, %v188
    %v190 = vrot.slane %v181, %v189
    %v191 = vlaneseq
    %v192 = vshrl.u32 %v191, 7
    %v193 = vsub.s32 2, %v192
    %v194 = vrot.slane %v181, %v193
    %v195 = vlaneseq
    %v196 = vshrl.u32 %v195, 7
    %v197 = vsub.s32 3, %v196
    %v198 = vrot.slane %v181, %v197
    %v199 = vlaneseq
    %v200 = vshrl.u32 %v199, 7
    %v201 = vsub.s32 4, %v200
    %v202 = vrot.slane %v181, %v201
    %v203 = vlaneseq
    %v204 = vshrl.u32 %v203, 7
    %v205 = vsub.s32 5, %v204
    %v206 = vrot.slane %v181, %v205
    %v213 = vadd.f32 %v169, %v186
    %v214 = vadd.f32 %v170, %v190
    %v215 = vadd.f32 %v171, %v194
    %v216 = vadd.f32 %v172, %v198
    %v217 = vadd.f32 %v173, %v202
    %v218 = vadd.f32 %v174, %v206
    %v219 = vadd.f32 %v175, %v186
    %v220 = vadd.f32 %v176, %v190
    %v221 = vadd.f32 %v177, %v194
    %v222 = vadd.f32 %v178, %v198
    %v223 = vadd.f32 %v179, %v202
    %v224 = vadd.f32 %v180, %v206
    %225 = vst [vmem:[#allocation8] sm:$0xff] %v213
    %226 = vst [vmem:[#allocation8 + $0x8] sm:$0xff] %v214
    %227 = vst [vmem:[#allocation8 + $0x10] sm:$0xff] %v215
    %228 = vst [vmem:[#allocation8 + $0x18] sm:$0xff] %v216
    %229 = vst [vmem:[#allocation8 + $0x20] sm:$0xff] %v217
    %230 = vst [vmem:[#allocation8 + $0x28] sm:$0xff] %v218
    %231 = vst [vmem:[#allocation8 + $0x30] sm:$0xff] %v219
    %232 = vst [vmem:[#allocation8 + $0x38] sm:$0xff] %v220
    %233 = vst [vmem:[#allocation8 + $0x40] sm:$0xff] %v221
    %234 = vst [vmem:[#allocation8 + $0x48] sm:$0xff] %v222
    %235 = vst [vmem:[#allocation8 + $0x50] sm:$0xff] %v223
    %236 = vst [vmem:[#allocation8 + $0x58] sm:$0xff] %v224
    // Predicated region
    $region26: #{tpu_custom_call.1} parent=1 // pred_check
      _
    $region27: #{tpu_custom_call.1} parent=1 // pred_check_branch
      %238 = sbr.rel (0) target = $region29
    $region28: #{tpu_custom_call.1} parent=1 // pred_region
      %s240 = ssub.s32 1536, 1536
      %241 = vsyncadd [#allocation4], %s240
      %s242 = sshll.u32 [#allocation8], 4
      %s243 = int_to_ptr.vmem [resolvable:$true] %s242
      %248 = dma.vmem_to_hbm [thread:$0]  %s243, 1536, %s3, [#allocation4], 768, 768, 48
    $region29: #{tpu_custom_call.1} parent=1 // pred_fallthru
      _
    // Predicated region
    $region30: #{tpu_custom_call.1} parent=1 // pred_check
      _
    $region31: #{tpu_custom_call.1} parent=1 // pred_check_branch
      %250 = sbr.rel (0) target = $region33
    $region32: #{tpu_custom_call.1} parent=1 // pred_region
      %251 = dma.done [#allocation4], 1536
    $region33: #{tpu_custom_call.1} parent=1 // pred_fallthru
      _
    %252 = vsyncpa [#allocation3], 1
    %253 = vsyncpa [#allocation6], 1
    %254 = vsyncpa [#allocation4], 1

</llo_original>
